<compile_context>
chip_gen: v6e
topology: v6e:2x2x1
jax: 0.10.0
libtpu: 0.0.40
codegen_flags: <defaults>
</compile_context>

<pallas_src>
import jax
import jax.numpy as jnp
from jax.experimental import pallas as pl
from jax.experimental.pallas import tpu as pltpu


D_IN, H1, H2, D_OUT = 1, 30, 15, 1

LANE = 128
MAX_TILE_B = 32768            # fat tiles; ~16 MiB VMEM footprint per step
SMALL_BATCH_THRESHOLD = 1024  # below this, plain XLA beats pallas_call overhead
VMEM_LIMIT_BYTES = 32 * 1024 * 1024


def mlp_kernel(x_ref, w1_ref, b1_ref, w2_ref, b2_ref, w3_ref, b3_ref, o_ref):
    # x_ref : (1, TB)  f32
    # w1_ref: (30, 1)  f32   b1_ref: (30, 1) f32
    # w2_ref: (15, 30) bf16  b2_ref: (15, 1) f32
    # w3_ref: (15, 1)  f32   b3_ref: (1, 1)  f32
    # o_ref : (1, TB)  f32
    x = x_ref[...]                                                   # (1, TB)

    # Layer 1: Linear(1, 30) == outer-product broadcast mul-add (pure VPU, f32).
    h1 = jnp.maximum(w1_ref[...] * x + b1_ref[...], 0.0)            # (30, TB)

    # Layer 2: Linear(30, 15) — the only real matmul (MXU), bf16 operands,
    # f32 accumulation.
    h2 = jnp.dot(w2_ref[...], h1.astype(jnp.bfloat16),
                 preferred_element_type=jnp.float32)                # (15, TB)
    h2 = jnp.maximum(h2 + b2_ref[...], 0.0)

    # Layer 3: Linear(15, 1) == 15-deep sublane reduction (XLU), f32.
    h3 = jnp.sum(w3_ref[...] * h2, axis=0, keepdims=True) + b3_ref[...]  # (1, TB)

    o_ref[...] = jnp.tanh(h3).astype(o_ref.dtype)


def _round_up(n, m):
    return ((n + m - 1) // m) * m


def mlp_forward(x, params, *, force_pallas=False):
    """x: (B, 1) float32 -> (B, 1) float32 (PyTorch-style shapes)."""
    w1, b1, w2, b2, w3t, b3 = params
    B = x.shape[0]

    # Small-batch fallback: at tiny B the kernel is a handful of vregs and the
    # pallas_call / DMA fixed cost dominates — let XLA fuse the whole MLP.
    if B < SMALL_BATCH_THRESHOLD and not force_pallas:
        return mlp_ref(x, params)

    # Tile selection: fewest grid steps; when more than one step is needed,
    # keep the step count even so v7x's two TensorCores split evenly.
    num_steps = pl.cdiv(B, MAX_TILE_B)
    if num_steps > 1:
        num_steps = _round_up(num_steps, 2)
    tile_b = _round_up(pl.cdiv(B, num_steps), LANE)
    b_pad = num_steps * tile_b

    # Batch-on-lanes layout: (B, 1) -> (1, B_pad), zero-padded tail (discarded).
    xt = x.reshape(1, B)
    if b_pad != B:
        xt = jnp.pad(xt, ((0, 0), (0, b_pad - B)))

    w2_bf16 = w2.astype(jnp.bfloat16)   # bf16 MXU operand, weights stay f32 elsewhere

    const = lambda shape: pl.BlockSpec(shape, lambda i: (0, 0))  # VMEM-resident

    out_t = pl.pallas_call(
        mlp_kernel,
        out_shape=jax.ShapeDtypeStruct((D_OUT, b_pad), jnp.float32),
        grid_spec=pl.GridSpec(
            grid=(num_steps,),
            in_specs=[
                pl.BlockSpec((1, tile_b), lambda i: (0, i)),   # x tile (lane-dense)
                const((H1, D_IN)),                             # w1 (30, 1)
                const((H1, 1)),                                # b1 (30, 1)
                const((H2, H1)),                               # w2 (15, 30) bf16
                const((H2, 1)),                                # b2 (15, 1)
                const((H2, D_OUT)),                            # w3^T (15, 1)
                const((1, 1)),                                 # b3 (1, 1)
            ],
            out_specs=pl.BlockSpec((1, tile_b), lambda i: (0, i)),
        ),
        compiler_params=pltpu.CompilerParams(
            dimension_semantics=("parallel",),
            vmem_limit_bytes=VMEM_LIMIT_BYTES,
        ),
    )(xt, w1, b1, w2_bf16, b2, w3t, b3)

    return out_t[:, :B].reshape(B, D_OUT)


def init_params(key):
    """PyTorch nn.Linear default init: U(-1/sqrt(fan_in), 1/sqrt(fan_in)).

    Weights stored (out, in); biases stored as (out, 1) columns; fc3 weight
    stored transposed as (15, 1) so the kernel's sublane reduction is a plain
    elementwise mul + sum.  All params kept f32; w2 is cast to bf16 only at
    the pallas_call boundary."""
    def linear(k, fan_in, fan_out):
        kw, kb = jax.random.split(k)
        bound = 1.0 / jnp.sqrt(jnp.float32(fan_in))
        w = jax.random.uniform(kw, (fan_out, fan_in), jnp.float32, -bound, bound)
        b = jax.random.uniform(kb, (fan_out, 1), jnp.float32, -bound, bound)
        return w, b

    k1, k2, k3 = jax.random.split(key, 3)
    w1, b1 = linear(k1, D_IN, H1)          # (30, 1), (30, 1)
    w2, b2 = linear(k2, H1, H2)            # (15, 30), (15, 1)
    w3, b3 = linear(k3, H2, D_OUT)         # (1, 15), (1, 1)
    w3t = w3.T                              # (15, 1)
    return (w1, b1, w2, b2, w3t, b3)


def mlp_ref(x, params):
    """Pure-JAX reference / small-batch fallback ((B, features) orientation)."""
    w1, b1, w2, b2, w3t, b3 = params
    h1 = jnp.maximum(x @ w1.T + b1.T, 0.0)      # (B, 30)
    h2 = jnp.maximum(h1 @ w2.T + b2.T, 0.0)     # (B, 15)
    return jnp.tanh(h2 @ w3t + b3)              # (B, 1)


if __name__ == "__main__":
    key = jax.random.PRNGKey(0)
    k_params, k_x = jax.random.split(key)

    params = init_params(k_params)

    # --- Pallas path (forced), lane-aligned and non-aligned (padded) batches.
    for B in (512, 300):
        kx = jax.random.fold_in(k_x, B)
        x = jax.random.uniform(kx, (B, D_IN), jnp.float32, -jnp.pi, jnp.pi)
        out = jax.block_until_ready(mlp_forward(x, params, force_pallas=True))
        ref = mlp_ref(x, params)
        assert out.shape == (B, D_OUT)
        # bf16 MXU operands -> loosened tolerance (tanh output in [-1, 1]).
        assert jnp.allclose(out, ref, atol=5e-3, rtol=5e-3), f"mismatch at B={B}"

    # --- Small-batch fallback path (pure XLA, exact f32).
    xs = jax.random.uniform(k_x, (64, D_IN), jnp.float32, -jnp.pi, jnp.pi)
    outs = jax.block_until_ready(mlp_forward(xs, params))
    assert outs.shape == (64, D_OUT)
    assert jnp.allclose(outs, mlp_ref(xs, params), atol=1e-5, rtol=1e-5)

    print("KERNEL_OK")
</pallas_src>

<mosaic_0001>
module attributes {stable_mosaic.version = 11 : i64} {
  func.func @mlp_kernel(%arg0: i32, %arg1: memref<1x512xf32, #tpu.memory_space<vmem>>, %arg2: memref<30x1xf32, #tpu.memory_space<vmem>>, %arg3: memref<30x1xf32, #tpu.memory_space<vmem>>, %arg4: memref<15x30xbf16, #tpu.memory_space<vmem>>, %arg5: memref<15x1xf32, #tpu.memory_space<vmem>>, %arg6: memref<15x1xf32, #tpu.memory_space<vmem>>, %arg7: memref<1x1xf32, #tpu.memory_space<vmem>>, %arg8: memref<1x512xf32, #tpu.memory_space<vmem>>) attributes {dimension_semantics = [#tpu.dimension_semantics<parallel>], iteration_bounds = array<i64: 1>, scalar_prefetch = 0 : i64, scratch_operands = 0 : i64, tpu.core_type = #tpu.core_type<tc>, window_params = [{transform_indices = @transform_0, window_bounds = array<i64: 1, 512>}, {pipeline_mode = #tpu.pipeline_mode<synchronous>, transform_indices = @transform_1, window_bounds = array<i64: 30, 1>}, {pipeline_mode = #tpu.pipeline_mode<synchronous>, transform_indices = @transform_2, window_bounds = array<i64: 30, 1>}, {pipeline_mode = #tpu.pipeline_mode<synchronous>, transform_indices = @transform_3, window_bounds = array<i64: 15, 30>}, {pipeline_mode = #tpu.pipeline_mode<synchronous>, transform_indices = @transform_4, window_bounds = array<i64: 15, 1>}, {pipeline_mode = #tpu.pipeline_mode<synchronous>, transform_indices = @transform_5, window_bounds = array<i64: 15, 1>}, {pipeline_mode = #tpu.pipeline_mode<synchronous>, transform_indices = @transform_6, window_bounds = array<i64: 1, 1>}, {transform_indices = @transform_7, window_bounds = array<i64: 1, 512>}]} {
    %c0 = arith.constant 0 : index
    %c0_0 = arith.constant 0 : index
    %0 = vector.load %arg1[%c0, %c0_0] : memref<1x512xf32, #tpu.memory_space<vmem>>, vector<1x512xf32>
    %c0_1 = arith.constant 0 : index
    %c0_2 = arith.constant 0 : index
    %1 = vector.load %arg2[%c0_1, %c0_2] : memref<30x1xf32, #tpu.memory_space<vmem>>, vector<30x1xf32>
    %2 = vector.broadcast %1 : vector<30x1xf32> to vector<30x512xf32>
    %3 = vector.broadcast %0 : vector<1x512xf32> to vector<30x512xf32>
    %4 = arith.mulf %2, %3 : vector<30x512xf32>
    %c0_3 = arith.constant 0 : index
    %c0_4 = arith.constant 0 : index
    %5 = vector.load %arg3[%c0_3, %c0_4] : memref<30x1xf32, #tpu.memory_space<vmem>>, vector<30x1xf32>
    %6 = vector.broadcast %5 : vector<30x1xf32> to vector<30x512xf32>
    %7 = arith.addf %4, %6 : vector<30x512xf32>
    %cst = arith.constant 0.000000e+00 : f32
    %8 = vector.broadcast %cst : f32 to vector<30x512xf32>
    %9 = arith.maximumf %7, %8 : vector<30x512xf32>
    %c0_5 = arith.constant 0 : index
    %c0_6 = arith.constant 0 : index
    %10 = vector.load %arg4[%c0_5, %c0_6] : memref<15x30xbf16, #tpu.memory_space<vmem>>, vector<15x30xbf16>
    %11 = arith.truncf %9 : vector<30x512xf32> to vector<30x512xbf16>
    %cst_7 = arith.constant dense<0.000000e+00> : vector<15x512xf32>
    %12 = tpu.matmul %10, %11, %cst_7 {dimension_numbers = #tpu.dot_dimension_numbers<[1], [0], [0], [1], [0, 0, 1, 1], [], []>} : vector<15x30xbf16>, vector<30x512xbf16>, vector<15x512xf32> -> vector<15x512xf32>
    %c0_8 = arith.constant 0 : index
    %c0_9 = arith.constant 0 : index
    %13 = vector.load %arg5[%c0_8, %c0_9] : memref<15x1xf32, #tpu.memory_space<vmem>>, vector<15x1xf32>
    %14 = vector.broadcast %13 : vector<15x1xf32> to vector<15x512xf32>
    %15 = arith.addf %12, %14 : vector<15x512xf32>
    %cst_10 = arith.constant 0.000000e+00 : f32
    %16 = vector.broadcast %cst_10 : f32 to vector<15x512xf32>
    %17 = arith.maximumf %15, %16 : vector<15x512xf32>
    %c0_11 = arith.constant 0 : index
    %c0_12 = arith.constant 0 : index
    %18 = vector.load %arg6[%c0_11, %c0_12] : memref<15x1xf32, #tpu.memory_space<vmem>>, vector<15x1xf32>
    %19 = vector.broadcast %18 : vector<15x1xf32> to vector<15x512xf32>
    %20 = arith.mulf %19, %17 : vector<15x512xf32>
    %cst_13 = arith.constant dense<0.000000e+00> : vector<512xf32>
    %21 = vector.multi_reduction <add>, %20, %cst_13 [0] : vector<15x512xf32> to vector<512xf32>
    %22 = vector.shape_cast %21 : vector<512xf32> to vector<1x512xf32>
    %c0_14 = arith.constant 0 : index
    %c0_15 = arith.constant 0 : index
    %23 = vector.load %arg7[%c0_14, %c0_15] : memref<1x1xf32, #tpu.memory_space<vmem>>, vector<1x1xf32>
    %24 = vector.broadcast %23 : vector<1x1xf32> to vector<1x512xf32>
    %25 = arith.addf %22, %24 : vector<1x512xf32>
    %26 = math.tanh %25 : vector<1x512xf32>
    %c0_16 = arith.constant 0 : index
    %c0_17 = arith.constant 0 : index
    %27 = vector.load %arg8[%c0_16, %c0_17] : memref<1x512xf32, #tpu.memory_space<vmem>>, vector<1x512xf32>
    tpu.vector_store %arg8[%c0_16, %c0_17], %26 {strides = array<i32>} : memref<1x512xf32, #tpu.memory_space<vmem>>, vector<1x512xf32>,
    return
  }
  func.func @transform_0(%arg0: i32) -> (i32, i32) {
    %c0_i32 = arith.constant 0 : i32
    %c0_i32_0 = arith.constant 0 : i32
    return %c0_i32, %arg0 : i32, i32
  }
  func.func @transform_1(%arg0: i32) -> (i32, i32) {
    %c0_i32 = arith.constant 0 : i32
    %c0_i32_0 = arith.constant 0 : i32
    %c0_i32_1 = arith.constant 0 : i32
    return %c0_i32, %c0_i32_0 : i32, i32
  }
  func.func @transform_2(%arg0: i32) -> (i32, i32) {
    %c0_i32 = arith.constant 0 : i32
    %c0_i32_0 = arith.constant 0 : i32
    %c0_i32_1 = arith.constant 0 : i32
    return %c0_i32, %c0_i32_0 : i32, i32
  }
  func.func @transform_3(%arg0: i32) -> (i32, i32) {
    %c0_i32 = arith.constant 0 : i32
    %c0_i32_0 = arith.constant 0 : i32
    %c0_i32_1 = arith.constant 0 : i32
    return %c0_i32, %c0_i32_0 : i32, i32
  }
  func.func @transform_4(%arg0: i32) -> (i32, i32) {
    %c0_i32 = arith.constant 0 : i32
    %c0_i32_0 = arith.constant 0 : i32
    %c0_i32_1 = arith.constant 0 : i32
    return %c0_i32, %c0_i32_0 : i32, i32
  }
  func.func @transform_5(%arg0: i32) -> (i32, i32) {
    %c0_i32 = arith.constant 0 : i32
    %c0_i32_0 = arith.constant 0 : i32
    %c0_i32_1 = arith.constant 0 : i32
    return %c0_i32, %c0_i32_0 : i32, i32
  }
  func.func @transform_6(%arg0: i32) -> (i32, i32) {
    %c0_i32 = arith.constant 0 : i32
    %c0_i32_0 = arith.constant 0 : i32
    %c0_i32_1 = arith.constant 0 : i32
    return %c0_i32, %c0_i32_0 : i32, i32
  }
  func.func @transform_7(%arg0: i32) -> (i32, i32) {
    %c0_i32 = arith.constant 0 : i32
    %c0_i32_0 = arith.constant 0 : i32
    return %c0_i32, %arg0 : i32, i32
  }
}

</mosaic_0001>

<llo_original>
// kernel: tpu_custom_call.1
$region0: #{tpu_custom_call.1}
  #allocation0 [shape = 'u32[]', space=smem, size = 0x4, offset = 0x4, fixed_abs, tag = 'smem constant byte address 0x4 - core index']
  #allocation1 [shape = 'u32[144,128]{1,0:T(1,128)}', space=vmem, size = 0x12000, scoped, tag = 'internal scratch']
  #allocation2 [shape = 'f32[1,1]{1,0:T(1,128)S(1)}', space=vmem, size = 0x200, scoped, tag = 'scoped memory for tpu_custom_call.1']
  %s0 = inlined_call_operand.vmem [shape: f32[1,512], index: 0, kind: input, shape index: {}]
  %s1 = inlined_call_operand.vmem [shape: f32[30,1], index: 1, kind: input, shape index: {}]
  %s2 = inlined_call_operand.vmem [shape: f32[30,1], index: 2, kind: input, shape index: {}]
  %s3 = inlined_call_operand.vmem [shape: bf16[15,30], index: 3, kind: input, shape index: {}]
  %s4 = inlined_call_operand.vmem [shape: f32[15,1], index: 4, kind: input, shape index: {}]
  %s5 = inlined_call_operand.vmem [shape: f32[15,1], index: 5, kind: input, shape index: {}]
  %s6 = inlined_call_operand.<no memory space> [shape: f32[1,1], index: 6, kind: input, shape index: {}]
  %s7 = inlined_call_operand.hbm [shape: f32[1,512], index: 7, kind: output, shape index: {}]
  %s8 = sld [smem:[#allocation0]]
  $region38: #{tpu_custom_call.1} parent=0
    _
  %s10 = ssub.s32 1, %s8
  %s11 = scalar_select 0, %s10, %s8
  %v12 = vstv %s6
  %13 = vst [vmem:[#allocation2] sm:$0x1] %v12
  $region1: #{tpu_custom_call.1} parent=0
    #allocation3 [shape = 'u8[2048]{0}', space=vmem, size = 0x800, scoped, tag = 'output window, operand 0, single buffered']
    #allocation4 [shape = 's32[1]{0}', space=sflag, size = 0x4, scoped, tag = 'scoped memory for tpu_custom_call.1']
    %14 = vsyncpa [#allocation4], 0
    // Predicated region
    $region2: #{tpu_custom_call.1} parent=1 // pred_check
      _
    $region3: #{tpu_custom_call.1} parent=1 // pred_check_branch
      %16 = sbr.rel (0) target = $region5
    $region4: #{tpu_custom_call.1} parent=1 // pred_region
      _
    $region5: #{tpu_custom_call.1} parent=1 // pred_fallthru
      _
    // Predicated region
    $region6: #{tpu_custom_call.1} parent=1 // pred_check
      _
    $region7: #{tpu_custom_call.1} parent=1 // pred_check_branch
      %18 = sbr.rel (0) target = $region9
    $region8: #{tpu_custom_call.1} parent=1 // pred_region
      _
    $region9: #{tpu_custom_call.1} parent=1 // pred_fallthru
      _
    // Predicated region
    $region10: #{tpu_custom_call.1} parent=1 // pred_check
      _
    $region11: #{tpu_custom_call.1} parent=1 // pred_check_branch
      %20 = sbr.rel (0) target = $region13
    $region12: #{tpu_custom_call.1} parent=1 // pred_region
      _
    $region13: #{tpu_custom_call.1} parent=1 // pred_fallthru
      _
    // Predicated region
    $region14: #{tpu_custom_call.1} parent=1 // pred_check
      _
    $region15: #{tpu_custom_call.1} parent=1 // pred_check_branch
      %22 = sbr.rel (0) target = $region17
    $region16: #{tpu_custom_call.1} parent=1 // pred_region
      _
    $region17: #{tpu_custom_call.1} parent=1 // pred_fallthru
      _
    // Predicated region
    $region18: #{tpu_custom_call.1} parent=1 // pred_check
      _
    $region19: #{tpu_custom_call.1} parent=1 // pred_check_branch
      %24 = sbr.rel (0) target = $region21
    $region20: #{tpu_custom_call.1} parent=1 // pred_region
      _
    $region21: #{tpu_custom_call.1} parent=1 // pred_fallthru
      _
    // Predicated region
    $region22: #{tpu_custom_call.1} parent=1 // pred_check
      _
    $region23: #{tpu_custom_call.1} parent=1 // pred_check_branch
      %26 = sbr.rel (0) target = $region25
    $region24: #{tpu_custom_call.1} parent=1 // pred_region
      _
    $region25: #{tpu_custom_call.1} parent=1 // pred_fallthru
      _
    // Predicated region
    $region26: #{tpu_custom_call.1} parent=1 // pred_check
      _
    $region27: #{tpu_custom_call.1} parent=1 // pred_check_branch
      %28 = sbr.rel (0) target = $region29
    $region28: #{tpu_custom_call.1} parent=1 // pred_region
      _
    $region29: #{tpu_custom_call.1} parent=1 // pred_fallthru
      _
    %v30 = vld [vmem:[%s0] sm:$0xf]
    %v31 = vld [vmem:[%s1] sm:$0xff]
    %v32 = vld [vmem:[%s1 + $0x8] sm:$0xff]
    %v33 = vld [vmem:[%s1 + $0x10] sm:$0xff]
    %v34 = vld [vmem:[%s1 + $0x18] sm:$0x3f]
    %36 = vset.pattern.permute.xlu0 0
    %37 = vperm.xlu0 %36, %v31
    %v38 = vpop.permute.xlu0 %37
    %41 = vset.pattern.permute.xlu0 0
    %42 = vperm.xlu0 %41, %v32
    %v43 = vpop.permute.xlu0 %42
    %46 = vset.pattern.permute.xlu0 0
    %47 = vperm.xlu0 %46, %v33
    %v48 = vpop.permute.xlu0 %47
    %51 = vset.pattern.permute.xlu0 0
    %52 = vperm.xlu0 %51, %v34
    %v53 = vpop.permute.xlu0 %52
    %v56 = vlaneseq
    %v57 = vshrl.u32 %v56, 7
    %v58 = vsub.s32 0, %v57
    %v59 = vrot.slane %v30, %v58
    %v60 = vlaneseq
    %v61 = vshrl.u32 %v60, 7
    %v62 = vsub.s32 1, %v61
    %v63 = vrot.slane %v30, %v62
    %v64 = vlaneseq
    %v65 = vshrl.u32 %v64, 7
    %v66 = vsub.s32 2, %v65
    %v67 = vrot.slane %v30, %v66
    %v68 = vlaneseq
    %v69 = vshrl.u32 %v68, 7
    %v70 = vsub.s32 3, %v69
    %v71 = vrot.slane %v30, %v70
    %v76 = vmul.f32 %v38, %v59
    %v77 = vmul.f32 %v38, %v63
    %v78 = vmul.f32 %v38, %v67
    %v79 = vmul.f32 %v38, %v71
    %v80 = vmul.f32 %v43, %v59
    %v81 = vmul.f32 %v43, %v63
    %v82 = vmul.f32 %v43, %v67
    %v83 = vmul.f32 %v43, %v71
    %v84 = vmul.f32 %v48, %v59
    %v85 = vmul.f32 %v48, %v63
    %v86 = vmul.f32 %v48, %v67
    %v87 = vmul.f32 %v48, %v71
    %v88 = vmul.f32 %v53, %v59
    %v89 = vmul.f32 %v53, %v63
    %v90 = vmul.f32 %v53, %v67
    %v91 = vmul.f32 %v53, %v71
    %v92 = vld [vmem:[%s2] sm:$0xff]
    %v93 = vld [vmem:[%s2 + $0x8] sm:$0xff]
    %v94 = vld [vmem:[%s2 + $0x10] sm:$0xff]
    %v95 = vld [vmem:[%s2 + $0x18] sm:$0x3f]
    %97 = vset.pattern.permute.xlu0 0
    %98 = vperm.xlu0 %97, %v92
    %v99 = vpop.permute.xlu0 %98
    %102 = vset.pattern.permute.xlu0 0
    %103 = vperm.xlu0 %102, %v93
    %v104 = vpop.permute.xlu0 %103
    %107 = vset.pattern.permute.xlu0 0
    %108 = vperm.xlu0 %107, %v94
    %v109 = vpop.permute.xlu0 %108
    %112 = vset.pattern.permute.xlu0 0
    %113 = vperm.xlu0 %112, %v95
    %v114 = vpop.permute.xlu0 %113
    %v116 = vadd.f32 %v76, %v99
    %v117 = vadd.f32 %v77, %v99
    %v118 = vadd.f32 %v78, %v99
    %v119 = vadd.f32 %v79, %v99
    %v120 = vadd.f32 %v80, %v104
    %v121 = vadd.f32 %v81, %v104
    %v122 = vadd.f32 %v82, %v104
    %v123 = vadd.f32 %v83, %v104
    %v124 = vadd.f32 %v84, %v109
    %v125 = vadd.f32 %v85, %v109
    %v126 = vadd.f32 %v86, %v109
    %v127 = vadd.f32 %v87, %v109
    %v128 = vadd.f32 %v88, %v114
    %v129 = vadd.f32 %v89, %v114
    %v130 = vadd.f32 %v90, %v114
    %v131 = vadd.f32 %v91, %v114
    %v132 = vmax.f32 %v116, 0.0
    %v133 = vmax.f32 %v117, 0.0
    %v134 = vmax.f32 %v118, 0.0
    %v135 = vmax.f32 %v119, 0.0
    %v136 = vmax.f32 %v120, 0.0
    %v137 = vmax.f32 %v121, 0.0
    %v138 = vmax.f32 %v122, 0.0
    %v139 = vmax.f32 %v123, 0.0
    %v140 = vmax.f32 %v124, 0.0
    %v141 = vmax.f32 %v125, 0.0
    %v142 = vmax.f32 %v126, 0.0
    %v143 = vmax.f32 %v127, 0.0
    %v144 = vmax.f32 %v128, 0.0
    %v145 = vmax.f32 %v129, 0.0
    %v146 = vmax.f32 %v130, 0.0
    %v147 = vmax.f32 %v131, 0.0
    %v148 = vld [vmem:[%s3] sm:$0xf]
    %v149 = vld [vmem:[%s3 + $0x4] sm:$0xf]
    %v150 = vpack.c.bf16 %v136, %v132
    %v151 = vpack.c.bf16 %v137, %v133
    %v152 = vpack.c.bf16 %v138, %v134
    %v153 = vpack.c.bf16 %v139, %v135
    %v154 = vpack.c.bf16 %v144, %v140
    %v155 = vpack.c.bf16 %v145, %v141
    %v156 = vpack.c.bf16 %v146, %v142
    %v157 = vpack.c.bf16 %v147, %v143
    %v158 = vld [vmem:[%s4] sm:$0xff]
    %v159 = vld [vmem:[%s4 + $0x8] sm:$0x7f]
    %161 = vset.pattern.permute.xlu0 0
    %162 = vperm.xlu0 %161, %v158
    %v163 = vpop.permute.xlu0 %162
    %166 = vset.pattern.permute.xlu0 0
    %167 = vperm.xlu0 %166, %v159
    %v168 = vpop.permute.xlu0 %167
    %v172 = vunpack.c.l.b16 %v148
    %v173 = vunpack.c.l.b16 %v149
    %v174 = vpack.c.b16 %v173, %v172
    %vm175 = vcmask 244736
    %v177 = vsel %vm175, %v174, 0
    %vm179 = vcmask 1046528
    %v181 = vsel %vm179, %v154, 0
    %v184 = vsel %vm179, %v155, 0
    %v187 = vsel %vm179, %v156, 0
    %v190 = vsel %vm179, %v157, 0
    %192 = vmatprep.subr.bf16.mxu0 0
    %193 = vmatpush1.bf16.msra.mxu0 0
    %194 = vmatprep.subr.bf16.mxu0 0
    %195 = vmatpush1.bf16.msra.mxu0 0
    %196 = vmatprep.subr.bf16.mxu0 0
    %197 = vmatpush1.bf16.msra.mxu0 0
    %198 = vmatprep.subr.bf16.mxu0 0
    %199 = vmatpush1.bf16.msra.mxu0 0
    %200 = vmatprep.subr.bf16.mxu0 0
    %201 = vmatpush1.bf16.msra.mxu0 0
    %202 = vmatprep.subr.bf16.mxu0 0
    %203 = vmatpush1.bf16.msra.mxu0 0
    %204 = vmatprep.subr.bf16.mxu0 %v184
    %205 = vmatpush1.bf16.msra.mxu0 %v181
    %206 = vmatprep.subr.bf16.mxu0 %v151
    %207 = vmatpush1.bf16.msra.mxu0 %v150
    %208 = vmatprep.subr.bf16.mxu0 0
    %209 = vmatpush2.bf16.msra.mxu0 0
    %210 = vmatprep.subr.bf16.mxu0 0
    %211 = vmatpush2.bf16.msra.mxu0 0
    %212 = vmatprep.subr.bf16.mxu0 0
    %213 = vmatpush2.bf16.msra.mxu0 0
    %214 = vmatprep.subr.bf16.mxu0 0
    %215 = vmatpush2.bf16.msra.mxu0 0
    %216 = vmatprep.subr.bf16.mxu0 0
    %217 = vmatpush2.bf16.msra.mxu0 0
    %218 = vmatprep.subr.bf16.mxu0 0
    %219 = vmatpush2.bf16.msra.mxu0 0
    %220 = vmatprep.subr.bf16.mxu0 0
    %221 = vmatpush2.bf16.msra.mxu0 0
    %222 = vmatprep.subr.bf16.mxu0 0
    %223 = vmatpush2.bf16.msra.mxu0 0
    %224 = vmatprep.mubr.bf16.mxu0 0
    %225 = vmatmul.mubr.bf16.gmra.mxu0 %v177
    %v226 = vpop.f32.mrf.mxu0
    %v227 = vadd.f32 %v163, %v226
    %v228 = vpop.f32.mrf.mxu0
    %v229 = vadd.f32 %v163, %v228
    %v230 = vpop.f32.mrf.mxu0
    %v231 = vadd.f32 %v168, %v230
    %v232 = vpop.f32.mrf.mxu0
    %v233 = vadd.f32 %v168, %v232
    %234 = vdwg.mxu0
    %235 = vmatprep.subr.bf16.mxu0 0
    %236 = vmatpush1.bf16.msra.mxu0 0
    %237 = vmatprep.subr.bf16.mxu0 0
    %238 = vmatpush1.bf16.msra.mxu0 0
    %239 = vmatprep.subr.bf16.mxu0 0
    %240 = vmatpush1.bf16.msra.mxu0 0
    %241 = vmatprep.subr.bf16.mxu0 0
    %242 = vmatpush1.bf16.msra.mxu0 0
    %243 = vmatprep.subr.bf16.mxu0 0
    %244 = vmatpush1.bf16.msra.mxu0 0
    %245 = vmatprep.subr.bf16.mxu0 0
    %246 = vmatpush1.bf16.msra.mxu0 0
    %247 = vmatprep.subr.bf16.mxu0 %v190
    %248 = vmatpush1.bf16.msra.mxu0 %v187
    %249 = vmatprep.subr.bf16.mxu0 %v153
    %250 = vmatpush1.bf16.msra.mxu0 %v152
    %251 = vmatprep.subr.bf16.mxu0 0
    %252 = vmatpush2.bf16.msra.mxu0 0
    %253 = vmatprep.subr.bf16.mxu0 0
    %254 = vmatpush2.bf16.msra.mxu0 0
    %255 = vmatprep.subr.bf16.mxu0 0
    %256 = vmatpush2.bf16.msra.mxu0 0
    %257 = vmatprep.subr.bf16.mxu0 0
    %258 = vmatpush2.bf16.msra.mxu0 0
    %259 = vmatprep.subr.bf16.mxu0 0
    %260 = vmatpush2.bf16.msra.mxu0 0
    %261 = vmatprep.subr.bf16.mxu0 0
    %262 = vmatpush2.bf16.msra.mxu0 0
    %263 = vmatprep.subr.bf16.mxu0 0
    %264 = vmatpush2.bf16.msra.mxu0 0
    %265 = vmatprep.subr.bf16.mxu0 0
    %266 = vmatpush2.bf16.msra.mxu0 0
    %267 = vmatprep.mubr.bf16.mxu0 0
    %268 = vmatmul.mubr.bf16.gmra.mxu0 %v177
    %v269 = vpop.f32.mrf.mxu0
    %v270 = vadd.f32 %v163, %v269
    %v271 = vpop.f32.mrf.mxu0
    %v272 = vadd.f32 %v163, %v271
    %v273 = vpop.f32.mrf.mxu0
    %v274 = vadd.f32 %v168, %v273
    %v275 = vpop.f32.mrf.mxu0
    %v276 = vadd.f32 %v168, %v275
    %277 = vdwg.mxu0
    %v278 = vmax.f32 %v227, 0.0
    %v279 = vmax.f32 %v229, 0.0
    %v280 = vmax.f32 %v270, 0.0
    %v281 = vmax.f32 %v272, 0.0
    %v282 = vmax.f32 %v231, 0.0
    %v283 = vmax.f32 %v233, 0.0
    %v284 = vmax.f32 %v274, 0.0
    %v285 = vmax.f32 %v276, 0.0
    %v286 = vld [vmem:[%s5] sm:$0xff]
    %v287 = vld [vmem:[%s5 + $0x8] sm:$0x7f]
    %289 = vset.pattern.permute.xlu0 0
    %290 = vperm.xlu0 %289, %v286
    %v291 = vpop.permute.xlu0 %290
    %294 = vset.pattern.permute.xlu0 0
    %295 = vperm.xlu0 %294, %v287
    %v296 = vpop.permute.xlu0 %295
    %v298 = vmul.f32 %v291, %v278
    %v299 = vmul.f32 %v291, %v279
    %v300 = vmul.f32 %v291, %v280
    %v301 = vmul.f32 %v291, %v281
    %v302 = vmul.f32 %v296, %v282
    %v303 = vmul.f32 %v296, %v283
    %v304 = vmul.f32 %v296, %v284
    %v305 = vmul.f32 %v296, %v285
    %v306 = vsel %vm179, %v302, 0.0
    %v307 = vadd.f32 %v298, %v306
    %v308 = vrot.slane %v307, 4
    %v309 = vadd.f32 %v307, %v308
    %v310 = vrot.slane %v309, 2
    %v311 = vadd.f32 %v309, %v310
    %v312 = vrot.slane %v311, 1
    %v313 = vadd.f32 %v311, %v312
    %v314 = vsel %vm179, %v303, 0.0
    %v315 = vadd.f32 %v299, %v314
    %v316 = vrot.slane %v315, 4
    %v317 = vadd.f32 %v315, %v316
    %v318 = vrot.slane %v317, 2
    %v319 = vadd.f32 %v317, %v318
    %v320 = vrot.slane %v319, 1
    %v321 = vadd.f32 %v319, %v320
    %v322 = vsel %vm179, %v304, 0.0
    %v323 = vadd.f32 %v300, %v322
    %v324 = vrot.slane %v323, 4
    %v325 = vadd.f32 %v323, %v324
    %v326 = vrot.slane %v325, 2
    %v327 = vadd.f32 %v325, %v326
    %v328 = vrot.slane %v327, 1
    %v329 = vadd.f32 %v327, %v328
    %v330 = vsel %vm179, %v305, 0.0
    %v331 = vadd.f32 %v301, %v330
    %v332 = vrot.slane %v331, 4
    %v333 = vadd.f32 %v331, %v332
    %v334 = vrot.slane %v333, 2
    %v335 = vadd.f32 %v333, %v334
    %v336 = vrot.slane %v335, 1
    %v337 = vadd.f32 %v335, %v336
    %v338 = vld [vmem:[#allocation2] sm:$0x1]
    %340 = vset.pattern.permute.xlu0 0
    %341 = vperm.xlu0 %340, %v338
    %v342 = vpop.permute.xlu0 %341
    %v344 = vlaneseq
    %v345 = vshrl.u32 %v344, 7
    %v346 = vsub.s32 0, %v345
    %v347 = vrot.slane %v342, %v346
    %v348 = vadd.f32 %v313, %v347
    %v349 = vadd.f32 %v321, %v347
    %v350 = vadd.f32 %v329, %v347
    %v351 = vadd.f32 %v337, %v347
    %v352 = vtanh.pop %v348
    %v353 = vtanh.pop %v349
    %v354 = vtanh.pop %v350
    %v355 = vtanh.pop %v351
    %v360 = vcombine.low %v352, %v353
    %v361 = vcombine.low %v354, %v355
    %v363 = vunpack.c.l.s4 1966171168
    %v364 = vunpack.c.0.s8 %v363
    %v365 = vlaneseq
    %v366 = vshrl.u32 %v365, 7
    %v367 = vsub.s32 %v364, %v366
    %v368 = vrot.slane %v360, %v367
    %v370 = vunpack.c.l.s4 1966171168
    %v371 = vunpack.c.0.s8 %v370
    %v372 = vlaneseq
    %v373 = vshrl.u32 %v372, 7
    %v374 = vsub.s32 %v371, %v373
    %v375 = vrot.slane %v361, %v374
    %v376 = vcombine.low %v368, %v375
    %v378 = vunpack.c.l.s4 1966171168
    %v379 = vunpack.c.0.s8 %v378
    %v380 = vlaneseq
    %v381 = vshrl.u32 %v380, 7
    %v382 = vsub.s32 %v379, %v381
    %v383 = vrot.slane %v376, %v382
    %v385 = vlaneseq
    %vm386 = vcmp.ge.s32.totalorder %v385, 0
    %vm387 = vcmp.lt.s32.totalorder %v385, 512
    %vm388 = vmand %vm386, %vm387
    %389 = vst.msk [vmem:[#allocation3] sm:$0xf] %vm388, %v383
    // Predicated region
    $region30: #{tpu_custom_call.1} parent=1 // pred_check
      _
    $region31: #{tpu_custom_call.1} parent=1 // pred_check_branch
      %391 = sbr.rel (0) target = $region33
    $region32: #{tpu_custom_call.1} parent=1 // pred_region
      %s393 = ssub.s32 64, 64
      %394 = vsyncadd [#allocation4], %s393
      %s396 = sshll.u32 [#allocation3], 4
      %s397 = int_to_ptr.vmem [resolvable:$true] %s396
      %399 = dma.vmem_to_hbm [thread:$0]  %s397, 64, %s7, [#allocation4]
    $region33: #{tpu_custom_call.1} parent=1 // pred_fallthru
      _
    // Predicated region
    $region34: #{tpu_custom_call.1} parent=1 // pred_check
      _
    $region35: #{tpu_custom_call.1} parent=1 // pred_check_branch
      %401 = sbr.rel (0) target = $region37
    $region36: #{tpu_custom_call.1} parent=1 // pred_region
      %402 = dma.done [#allocation4], 64
    $region37: #{tpu_custom_call.1} parent=1 // pred_fallthru
      _
    %403 = vsyncpa [#allocation4], 1

</llo_original>
